<compile_context>
chip_gen: v7x
topology: tpu7x:2x2x1
jax: 0.10.0
libtpu: 0.0.40
codegen_flags: <defaults>
</compile_context>

<pallas_src>
import jax
import jax.numpy as jnp
from jax.experimental import pallas as pl
from jax.experimental.pallas import tpu as pltpu

IN_FEATURES = 28 * 28    # 784
HIDDEN = 20
MIN_SPLIT_BATCH = 256    # below this, one full-batch tile (splitting adds only overhead)


def _round_up(x, m):
    return ((x + m - 1) // m) * m


def _tpu_tiling_defaults():
    """Per-generation (max batch tile, vmem_limit_bytes).

    v5e/v6e have 128 MiB physical VMEM -> big tiles + 96 MiB scoped limit.
    v7x has only 64 MiB physical VMEM per TensorCore -> cap TB at 1024 and stay
    under ~48 MiB so double-buffering is preserved. Unknown -> conservative.
    """
    try:
        vmem_cap = pltpu.get_tpu_info().vmem_capacity_bytes
    except Exception:
        vmem_cap = None
    if vmem_cap is not None and vmem_cap >= (100 << 20):
        return 2048, 96 << 20
    return 1024, 48 << 20


def autoencoder_kernel(x_ref, we_ref, be_ref, wd_ref, bd_ref, o_ref):
    # x_ref:  (TB, 784)  f32 input tile
    # we_ref: (784, 20)  encoder weight, pre-transposed (in, out), f32
    # be_ref: (1, 20)    encoder bias, f32
    # wd_ref: (20, 784)  decoder weight, pre-transposed (in, out), f32
    # bd_ref: (1, 784)   decoder bias, f32
    # o_ref:  (TB, 784)  f32 output tile
    x = x_ref[...]
    h = jnp.dot(x, we_ref[...], preferred_element_type=jnp.float32) + be_ref[...]
    y = jnp.dot(h, wd_ref[...], preferred_element_type=jnp.float32) + bd_ref[...]
    o_ref[...] = y.astype(o_ref.dtype)


def prepare_params(w_enc, b_enc, w_dec, b_dec):
    """One-time parameter prep (hoisted out of the per-forward hot path).

    PyTorch convention in:  w_enc (20, 784), b_enc (20,), w_dec (784, 20), b_dec (784,).
    Returns weights pre-transposed to (in, out) layout and biases reshaped to 2-D, f32.
    """
    we_t = jnp.transpose(w_enc).astype(jnp.float32)            # (784, 20)
    be = b_enc.astype(jnp.float32).reshape(1, HIDDEN)           # (1, 20)
    wd_t = jnp.transpose(w_dec).astype(jnp.float32)             # (20, 784)
    bd = b_dec.astype(jnp.float32).reshape(1, IN_FEATURES)      # (1, 784)
    return we_t, be, wd_t, bd


def autoencoder_forward(x_nchw, we_t, be, wd_t, bd):
    """x_nchw: (B, 1, 28, 28) float32; params from prepare_params()."""
    B = x_nchw.shape[0]
    x_flat = x_nchw.reshape(B, IN_FEATURES)

    tb_max, vmem_limit = _tpu_tiling_defaults()

    if B < MIN_SPLIT_BATCH:
        # Small batch: one full-batch tile (block == full dim is always legal).
        TB = B
    else:
        # Balanced tiling with an even (>= 2) tile count so v7x can split the
        # "parallel" grid axis across both TensorCores and the last tile is not
        # mostly padding.
        n_tiles = max(2, pl.cdiv(B, tb_max))
        n_tiles = _round_up(n_tiles, 2)
        TB = _round_up(pl.cdiv(B, n_tiles), 8)
    grid = (pl.cdiv(B, TB),)

    param_bytes = (IN_FEATURES * HIDDEN * 2 + HIDDEN + IN_FEATURES) * 4
    cost = pl.CostEstimate(
        flops=2 * B * IN_FEATURES * HIDDEN * 2,
        transcendentals=0,
        bytes_accessed=2 * B * IN_FEATURES * 4 + param_bytes,
    )

    out_flat = pl.pallas_call(
        autoencoder_kernel,
        out_shape=jax.ShapeDtypeStruct((B, IN_FEATURES), x_flat.dtype),
        grid=grid,
        in_specs=[
            pl.BlockSpec((TB, IN_FEATURES), lambda i: (i, 0)),      # x: tiled over batch
            pl.BlockSpec((IN_FEATURES, HIDDEN), lambda i: (0, 0)),  # weights/biases resident
            pl.BlockSpec((1, HIDDEN), lambda i: (0, 0)),
            pl.BlockSpec((HIDDEN, IN_FEATURES), lambda i: (0, 0)),
            pl.BlockSpec((1, IN_FEATURES), lambda i: (0, 0)),
        ],
        out_specs=pl.BlockSpec((TB, IN_FEATURES), lambda i: (i, 0)),
        compiler_params=pltpu.CompilerParams(
            dimension_semantics=("parallel",),                      # megacore-shardable (v7x)
            vmem_limit_bytes=vmem_limit,
        ),
        cost_estimate=cost,
    )(x_flat, we_t, be, wd_t, bd)

    return out_flat.reshape(B, 1, 28, 28)


def init_params(key):
    """Deterministic init matching nn.Linear's default U(-1/sqrt(in), 1/sqrt(in))."""
    k1, k2, k3, k4 = jax.random.split(key, 4)
    bound_e = 1.0 / (IN_FEATURES ** 0.5)
    bound_d = 1.0 / (HIDDEN ** 0.5)
    w_enc = jax.random.uniform(k1, (HIDDEN, IN_FEATURES), jnp.float32,
                               minval=-bound_e, maxval=bound_e)
    b_enc = jax.random.uniform(k2, (HIDDEN,), jnp.float32,
                               minval=-bound_e, maxval=bound_e)
    w_dec = jax.random.uniform(k3, (IN_FEATURES, HIDDEN), jnp.float32,
                               minval=-bound_d, maxval=bound_d)
    b_dec = jax.random.uniform(k4, (IN_FEATURES,), jnp.float32,
                               minval=-bound_d, maxval=bound_d)
    return w_enc, b_enc, w_dec, b_dec


def _reference(x_nchw, w_enc, b_enc, w_dec, b_dec):
    B = x_nchw.shape[0]
    x_flat = x_nchw.reshape(B, IN_FEATURES)
    return ((x_flat @ w_enc.T + b_enc) @ w_dec.T + b_dec).reshape(B, 1, 28, 28)


if __name__ == "__main__":
    key = jax.random.PRNGKey(0)
    k_x, k_x2, k_p = jax.random.split(key, 3)

    w_enc, b_enc, w_dec, b_dec = init_params(k_p)
    we_t, be, wd_t, bd = prepare_params(w_enc, b_enc, w_dec, b_dec)

    forward = jax.jit(autoencoder_forward)

    # 1) Small batch (single-tile path), consistent with the module's (B, 1, 28, 28) input.
    batch_size = 8
    x = jax.random.normal(k_x, (batch_size, 1, 28, 28), dtype=jnp.float32)
    out = jax.block_until_ready(forward(x, we_t, be, wd_t, bd))
    assert out.shape == (batch_size, 1, 28, 28)
    ref = _reference(x, w_enc, b_enc, w_dec, b_dec)
    assert jnp.allclose(out, ref, atol=2e-3, rtol=2e-3)

    # 2) Larger batch exercising the balanced multi-tile (>= 2 iteration) grid path.
    batch_size2 = 512
    x2 = jax.random.normal(k_x2, (batch_size2, 1, 28, 28), dtype=jnp.float32)
    out2 = jax.block_until_ready(forward(x2, we_t, be, wd_t, bd))
    assert out2.shape == (batch_size2, 1, 28, 28)
    ref2 = _reference(x2, w_enc, b_enc, w_dec, b_dec)
    assert jnp.allclose(out2, ref2, atol=2e-3, rtol=2e-3)

    print("KERNEL_OK")
</pallas_src>

<mosaic_0001>
module attributes {stable_mosaic.version = 11 : i64} {
  func.func @autoencoder_kernel(%arg0: i32, %arg1: memref<8x784xf32, #tpu.memory_space<vmem>>, %arg2: memref<784x20xf32, #tpu.memory_space<vmem>>, %arg3: memref<1x20xf32, #tpu.memory_space<vmem>>, %arg4: memref<20x784xf32, #tpu.memory_space<vmem>>, %arg5: memref<1x784xf32, #tpu.memory_space<vmem>>, %arg6: memref<8x784xf32, #tpu.memory_space<vmem>>) attributes {dimension_semantics = [#tpu.dimension_semantics<parallel>], iteration_bounds = array<i64: 1>, scalar_prefetch = 0 : i64, scratch_operands = 0 : i64, tpu.core_type = #tpu.core_type<tc>, window_params = [{transform_indices = @transform_0, window_bounds = array<i64: 8, 784>}, {pipeline_mode = #tpu.pipeline_mode<synchronous>, transform_indices = @transform_1, window_bounds = array<i64: 784, 20>}, {pipeline_mode = #tpu.pipeline_mode<synchronous>, transform_indices = @transform_2, window_bounds = array<i64: 1, 20>}, {pipeline_mode = #tpu.pipeline_mode<synchronous>, transform_indices = @transform_3, window_bounds = array<i64: 20, 784>}, {pipeline_mode = #tpu.pipeline_mode<synchronous>, transform_indices = @transform_4, window_bounds = array<i64: 1, 784>}, {transform_indices = @transform_5, window_bounds = array<i64: 8, 784>}]} {
    %c0 = arith.constant 0 : index
    %c0_0 = arith.constant 0 : index
    %0 = vector.load %arg1[%c0, %c0_0] : memref<8x784xf32, #tpu.memory_space<vmem>>, vector<8x784xf32>
    %c0_1 = arith.constant 0 : index
    %c0_2 = arith.constant 0 : index
    %1 = vector.load %arg2[%c0_1, %c0_2] : memref<784x20xf32, #tpu.memory_space<vmem>>, vector<784x20xf32>
    %cst = arith.constant dense<0.000000e+00> : vector<8x20xf32>
    %2 = tpu.matmul %0, %1, %cst {dimension_numbers = #tpu.dot_dimension_numbers<[1], [0], [0], [1], [0, 0, 1, 1], [], []>} : vector<8x784xf32>, vector<784x20xf32>, vector<8x20xf32> -> vector<8x20xf32>
    %c0_3 = arith.constant 0 : index
    %c0_4 = arith.constant 0 : index
    %3 = vector.load %arg3[%c0_3, %c0_4] : memref<1x20xf32, #tpu.memory_space<vmem>>, vector<1x20xf32>
    %4 = vector.broadcast %3 : vector<1x20xf32> to vector<8x20xf32>
    %5 = arith.addf %2, %4 : vector<8x20xf32>
    %c0_5 = arith.constant 0 : index
    %c0_6 = arith.constant 0 : index
    %6 = vector.load %arg4[%c0_5, %c0_6] : memref<20x784xf32, #tpu.memory_space<vmem>>, vector<20x784xf32>
    %cst_7 = arith.constant dense<0.000000e+00> : vector<8x784xf32>
    %7 = tpu.matmul %5, %6, %cst_7 {dimension_numbers = #tpu.dot_dimension_numbers<[1], [0], [0], [1], [0, 0, 1, 1], [], []>} : vector<8x20xf32>, vector<20x784xf32>, vector<8x784xf32> -> vector<8x784xf32>
    %c0_8 = arith.constant 0 : index
    %c0_9 = arith.constant 0 : index
    %8 = vector.load %arg5[%c0_8, %c0_9] : memref<1x784xf32, #tpu.memory_space<vmem>>, vector<1x784xf32>
    %9 = vector.broadcast %8 : vector<1x784xf32> to vector<8x784xf32>
    %10 = arith.addf %7, %9 : vector<8x784xf32>
    %c0_10 = arith.constant 0 : index
    %c0_11 = arith.constant 0 : index
    %11 = vector.load %arg6[%c0_10, %c0_11] : memref<8x784xf32, #tpu.memory_space<vmem>>, vector<8x784xf32>
    tpu.vector_store %arg6[%c0_10, %c0_11], %10 {strides = array<i32>} : memref<8x784xf32, #tpu.memory_space<vmem>>, vector<8x784xf32>,
    return
  }
  func.func @transform_0(%arg0: i32) -> (i32, i32) {
    %c0_i32 = arith.constant 0 : i32
    %c0_i32_0 = arith.constant 0 : i32
    return %arg0, %c0_i32 : i32, i32
  }
  func.func @transform_1(%arg0: i32) -> (i32, i32) {
    %c0_i32 = arith.constant 0 : i32
    %c0_i32_0 = arith.constant 0 : i32
    %c0_i32_1 = arith.constant 0 : i32
    return %c0_i32, %c0_i32_0 : i32, i32
  }
  func.func @transform_2(%arg0: i32) -> (i32, i32) {
    %c0_i32 = arith.constant 0 : i32
    %c0_i32_0 = arith.constant 0 : i32
    %c0_i32_1 = arith.constant 0 : i32
    return %c0_i32, %c0_i32_0 : i32, i32
  }
  func.func @transform_3(%arg0: i32) -> (i32, i32) {
    %c0_i32 = arith.constant 0 : i32
    %c0_i32_0 = arith.constant 0 : i32
    %c0_i32_1 = arith.constant 0 : i32
    return %c0_i32, %c0_i32_0 : i32, i32
  }
  func.func @transform_4(%arg0: i32) -> (i32, i32) {
    %c0_i32 = arith.constant 0 : i32
    %c0_i32_0 = arith.constant 0 : i32
    %c0_i32_1 = arith.constant 0 : i32
    return %c0_i32, %c0_i32_0 : i32, i32
  }
  func.func @transform_5(%arg0: i32) -> (i32, i32) {
    %c0_i32 = arith.constant 0 : i32
    %c0_i32_0 = arith.constant 0 : i32
    return %arg0, %c0_i32 : i32, i32
  }
}

</mosaic_0001>

<llo_original>
// kernel: autoencoder_forward.1
$region0: #{autoencoder_forward.1}
  #allocation0 [shape = 'u32[]', space=smem, size = 0x4, offset = 0x4, fixed_abs, tag = 'smem constant byte address 0x4 - core index']
  #allocation1 [shape = 'u32[144,128]{1,0:T(1,128)}', space=vmem, size = 0x12000, scoped, tag = 'internal scratch']
  %s0 = inlined_call_operand.vmem [shape: f32[8,784], index: 0, kind: input, shape index: {}]
  %s1 = inlined_call_operand.vmem [shape: f32[784,20], index: 1, kind: input, shape index: {}]
  %s2 = inlined_call_operand.vmem [shape: f32[1,20], index: 2, kind: input, shape index: {}]
  %s3 = inlined_call_operand.vmem [shape: f32[20,784], index: 3, kind: input, shape index: {}]
  %s4 = inlined_call_operand.vmem [shape: f32[1,784], index: 4, kind: input, shape index: {}]
  %s5 = inlined_call_operand.vmem [shape: f32[8,784], index: 5, kind: output, shape index: {}]
  %s6 = sld [smem:[#allocation0]]
  $region30: #{autoencoder_forward.1} parent=0
    _
  %s8 = ssub.s32 1, %s6
  %s9 = scalar_select 0, %s8, %s6
  // Predicated region
  $region2: #{autoencoder_forward.1} parent=0 // pred_check
    _
  $region3: #{autoencoder_forward.1} parent=0 // pred_check_branch
    %11 = sbr.rel (0) target = $region5
  $region4: #{autoencoder_forward.1} parent=0 // pred_region
    _
  $region5: #{autoencoder_forward.1} parent=0 // pred_fallthru
    _
  // Predicated region
  $region6: #{autoencoder_forward.1} parent=0 // pred_check
    _
  $region7: #{autoencoder_forward.1} parent=0 // pred_check_branch
    %13 = sbr.rel (0) target = $region9
  $region8: #{autoencoder_forward.1} parent=0 // pred_region
    _
  $region9: #{autoencoder_forward.1} parent=0 // pred_fallthru
    _
  // Predicated region
  $region10: #{autoencoder_forward.1} parent=0 // pred_check
    _
  $region11: #{autoencoder_forward.1} parent=0 // pred_check_branch
    %15 = sbr.rel (0) target = $region13
  $region12: #{autoencoder_forward.1} parent=0 // pred_region
    _
  $region13: #{autoencoder_forward.1} parent=0 // pred_fallthru
    _
  // Predicated region
  $region14: #{autoencoder_forward.1} parent=0 // pred_check
    _
  $region15: #{autoencoder_forward.1} parent=0 // pred_check_branch
    %17 = sbr.rel (0) target = $region17
  $region16: #{autoencoder_forward.1} parent=0 // pred_region
    _
  $region17: #{autoencoder_forward.1} parent=0 // pred_fallthru
    _
  // Predicated region
  $region18: #{autoencoder_forward.1} parent=0 // pred_check
    _
  $region19: #{autoencoder_forward.1} parent=0 // pred_check_branch
    %19 = sbr.rel (0) target = $region21
  $region20: #{autoencoder_forward.1} parent=0 // pred_region
    _
  $region21: #{autoencoder_forward.1} parent=0 // pred_fallthru
    _
  %v20 = vld [vmem:[%s0] sm:$0xff]
  %v21 = vld [vmem:[%s0 + $0x8] sm:$0xff]
  %v22 = vld [vmem:[%s0 + $0x10] sm:$0xff]
  %v23 = vld [vmem:[%s0 + $0x18] sm:$0xff]
  %v24 = vld [vmem:[%s0 + $0x20] sm:$0xff]
  %v25 = vld [vmem:[%s0 + $0x28] sm:$0xff]
  %v26 = vld [vmem:[%s0 + $0x30] sm:$0xff]
  %v27 = vld [vmem:[%s1] sm:$0xff]
  %v28 = vld [vmem:[%s1 + $0x8] sm:$0xff]
  %v29 = vld [vmem:[%s1 + $0x10] sm:$0xff]
  %v30 = vld [vmem:[%s1 + $0x18] sm:$0xff]
  %v31 = vld [vmem:[%s1 + $0x20] sm:$0xff]
  %v32 = vld [vmem:[%s1 + $0x28] sm:$0xff]
  %v33 = vld [vmem:[%s1 + $0x30] sm:$0xff]
  %v34 = vld [vmem:[%s1 + $0x38] sm:$0xff]
  %v35 = vld [vmem:[%s1 + $0x40] sm:$0xff]
  %v36 = vld [vmem:[%s1 + $0x48] sm:$0xff]
  %v37 = vld [vmem:[%s1 + $0x50] sm:$0xff]
  %v38 = vld [vmem:[%s1 + $0x58] sm:$0xff]
  %v39 = vld [vmem:[%s1 + $0x60] sm:$0xff]
  %v40 = vld [vmem:[%s1 + $0x68] sm:$0xff]
  %v41 = vld [vmem:[%s1 + $0x70] sm:$0xff]
  %v42 = vld [vmem:[%s1 + $0x78] sm:$0xff]
  %v43 = vld [vmem:[%s1 + $0x80] sm:$0xff]
  %v44 = vld [vmem:[%s1 + $0x88] sm:$0xff]
  %v45 = vld [vmem:[%s1 + $0x90] sm:$0xff]
  %v46 = vld [vmem:[%s1 + $0x98] sm:$0xff]
  %v47 = vld [vmem:[%s1 + $0xa0] sm:$0xff]
  %v48 = vld [vmem:[%s1 + $0xa8] sm:$0xff]
  %v49 = vld [vmem:[%s1 + $0xb0] sm:$0xff]
  %v50 = vld [vmem:[%s1 + $0xb8] sm:$0xff]
  %v51 = vld [vmem:[%s1 + $0xc0] sm:$0xff]
  %v52 = vld [vmem:[%s1 + $0xc8] sm:$0xff]
  %v53 = vld [vmem:[%s1 + $0xd0] sm:$0xff]
  %v54 = vld [vmem:[%s1 + $0xd8] sm:$0xff]
  %v55 = vld [vmem:[%s1 + $0xe0] sm:$0xff]
  %v56 = vld [vmem:[%s1 + $0xe8] sm:$0xff]
  %v57 = vld [vmem:[%s1 + $0xf0] sm:$0xff]
  %v58 = vld [vmem:[%s1 + $0xf8] sm:$0xff]
  %v59 = vld [vmem:[%s1 + $0x100] sm:$0xff]
  %v60 = vld [vmem:[%s1 + $0x108] sm:$0xff]
  %v61 = vld [vmem:[%s1 + $0x110] sm:$0xff]
  %v62 = vld [vmem:[%s1 + $0x118] sm:$0xff]
  %v63 = vld [vmem:[%s1 + $0x120] sm:$0xff]
  %v64 = vld [vmem:[%s1 + $0x128] sm:$0xff]
  %v65 = vld [vmem:[%s1 + $0x130] sm:$0xff]
  %v66 = vld [vmem:[%s1 + $0x138] sm:$0xff]
  %v67 = vld [vmem:[%s1 + $0x140] sm:$0xff]
  %v68 = vld [vmem:[%s1 + $0x148] sm:$0xff]
  %v69 = vld [vmem:[%s1 + $0x150] sm:$0xff]
  %v70 = vld [vmem:[%s1 + $0x158] sm:$0xff]
  %v71 = vld [vmem:[%s1 + $0x160] sm:$0xff]
  %v72 = vld [vmem:[%s1 + $0x168] sm:$0xff]
  %v73 = vld [vmem:[%s1 + $0x170] sm:$0xff]
  %v74 = vld [vmem:[%s1 + $0x178] sm:$0xff]
  %v75 = vld [vmem:[%s1 + $0x180] sm:$0xff]
  %v76 = vld [vmem:[%s1 + $0x188] sm:$0xff]
  %v77 = vld [vmem:[%s1 + $0x190] sm:$0xff]
  %v78 = vld [vmem:[%s1 + $0x198] sm:$0xff]
  %v79 = vld [vmem:[%s1 + $0x1a0] sm:$0xff]
  %v80 = vld [vmem:[%s1 + $0x1a8] sm:$0xff]
  %v81 = vld [vmem:[%s1 + $0x1b0] sm:$0xff]
  %v82 = vld [vmem:[%s1 + $0x1b8] sm:$0xff]
  %v83 = vld [vmem:[%s1 + $0x1c0] sm:$0xff]
  %v84 = vld [vmem:[%s1 + $0x1c8] sm:$0xff]
  %v85 = vld [vmem:[%s1 + $0x1d0] sm:$0xff]
  %v86 = vld [vmem:[%s1 + $0x1d8] sm:$0xff]
  %v87 = vld [vmem:[%s1 + $0x1e0] sm:$0xff]
  %v88 = vld [vmem:[%s1 + $0x1e8] sm:$0xff]
  %v89 = vld [vmem:[%s1 + $0x1f0] sm:$0xff]
  %v90 = vld [vmem:[%s1 + $0x1f8] sm:$0xff]
  %v91 = vld [vmem:[%s1 + $0x200] sm:$0xff]
  %v92 = vld [vmem:[%s1 + $0x208] sm:$0xff]
  %v93 = vld [vmem:[%s1 + $0x210] sm:$0xff]
  %v94 = vld [vmem:[%s1 + $0x218] sm:$0xff]
  %v95 = vld [vmem:[%s1 + $0x220] sm:$0xff]
  %v96 = vld [vmem:[%s1 + $0x228] sm:$0xff]
  %v97 = vld [vmem:[%s1 + $0x230] sm:$0xff]
  %v98 = vld [vmem:[%s1 + $0x238] sm:$0xff]
  %v99 = vld [vmem:[%s1 + $0x240] sm:$0xff]
  %v100 = vld [vmem:[%s1 + $0x248] sm:$0xff]
  %v101 = vld [vmem:[%s1 + $0x250] sm:$0xff]
  %v102 = vld [vmem:[%s1 + $0x258] sm:$0xff]
  %v103 = vld [vmem:[%s1 + $0x260] sm:$0xff]
  %v104 = vld [vmem:[%s1 + $0x268] sm:$0xff]
  %v105 = vld [vmem:[%s1 + $0x270] sm:$0xff]
  %v106 = vld [vmem:[%s1 + $0x278] sm:$0xff]
  %v107 = vld [vmem:[%s1 + $0x280] sm:$0xff]
  %v108 = vld [vmem:[%s1 + $0x288] sm:$0xff]
  %v109 = vld [vmem:[%s1 + $0x290] sm:$0xff]
  %v110 = vld [vmem:[%s1 + $0x298] sm:$0xff]
  %v111 = vld [vmem:[%s1 + $0x2a0] sm:$0xff]
  %v112 = vld [vmem:[%s1 + $0x2a8] sm:$0xff]
  %v113 = vld [vmem:[%s1 + $0x2b0] sm:$0xff]
  %v114 = vld [vmem:[%s1 + $0x2b8] sm:$0xff]
  %v115 = vld [vmem:[%s1 + $0x2c0] sm:$0xff]
  %v116 = vld [vmem:[%s1 + $0x2c8] sm:$0xff]
  %v117 = vld [vmem:[%s1 + $0x2d0] sm:$0xff]
  %v118 = vld [vmem:[%s1 + $0x2d8] sm:$0xff]
  %v119 = vld [vmem:[%s1 + $0x2e0] sm:$0xff]
  %v120 = vld [vmem:[%s1 + $0x2e8] sm:$0xff]
  %v121 = vld [vmem:[%s1 + $0x2f0] sm:$0xff]
  %v122 = vld [vmem:[%s1 + $0x2f8] sm:$0xff]
  %v123 = vld [vmem:[%s1 + $0x300] sm:$0xff]
  %v124 = vld [vmem:[%s1 + $0x308] sm:$0xff]
  %v125 = vld [vmem:[%s2] sm:$0x1]
  %v127 = vlaneseq
  %v128 = vshrl.u32 %v127, 7
  %v129 = vsub.s32 0, %v128
  %v130 = vrot.slane %v125, %v129
  %vm132 = vcmask 130048
  %v134 = vsel %vm132, %v26, 0
  %136 = vmatprep.subr.mxu0 0.0
  %137 = vmatpush1.msra.mxu0 %v27
  %138 = vmatprep.subr.mxu0 0.0
  %139 = vmatpush1.msra.mxu0 %v28
  %140 = vmatprep.subr.mxu0 0.0
  %141 = vmatpush1.msra.mxu0 %v29
  %142 = vmatprep.subr.mxu0 0.0
  %143 = vmatpush1.msra.mxu0 %v30
  %144 = vmatprep.subr.mxu0 0.0
  %145 = vmatpush1.msra.mxu0 %v31
  %146 = vmatprep.subr.mxu0 0.0
  %147 = vmatpush1.msra.mxu0 %v32
  %148 = vmatprep.subr.mxu0 0.0
  %149 = vmatpush1.msra.mxu0 %v33
  %150 = vmatprep.subr.mxu0 0.0
  %151 = vmatpush1.msra.mxu0 %v34
  %152 = vmatprep.subr.mxu0 0.0
  %153 = vmatpush1.msra.mxu0 %v35
  %154 = vmatprep.subr.mxu0 0.0
  %155 = vmatpush1.msra.mxu0 %v36
  %156 = vmatprep.subr.mxu0 0.0
  %157 = vmatpush1.msra.mxu0 %v37
  %158 = vmatprep.subr.mxu0 0.0
  %159 = vmatpush1.msra.mxu0 %v38
  %160 = vmatprep.subr.mxu0 0.0
  %161 = vmatpush1.msra.mxu0 %v39
  %162 = vmatprep.subr.mxu0 0.0
  %163 = vmatpush1.msra.mxu0 %v40
  %164 = vmatprep.subr.mxu0 0.0
  %165 = vmatpush1.msra.mxu0 %v41
  %166 = vmatprep.subr.mxu0 0.0
  %167 = vmatpush1.msra.mxu0 %v42
  %168 = vmatprep.subr.mxu0 0.0
  %169 = vmatpush1.msra.mxu0 %v43
  %170 = vmatprep.subr.mxu0 0.0
  %171 = vmatpush1.msra.mxu0 %v44
  %172 = vmatprep.subr.mxu0 0.0
  %173 = vmatpush1.msra.mxu0 %v45
  %174 = vmatprep.subr.mxu0 0.0
  %175 = vmatpush1.msra.mxu0 %v46
  %176 = vmatprep.subr.mxu0 0.0
  %177 = vmatpush1.msra.mxu0 %v47
  %178 = vmatprep.subr.mxu0 0.0
  %179 = vmatpush1.msra.mxu0 %v48
  %180 = vmatprep.subr.mxu0 0.0
  %181 = vmatpush1.msra.mxu0 %v49
  %182 = vmatprep.subr.mxu0 0.0
  %183 = vmatpush1.msra.mxu0 %v50
  %184 = vmatprep.subr.mxu0 0.0
  %185 = vmatpush1.msra.mxu0 %v51
  %186 = vmatprep.subr.mxu0 0.0
  %187 = vmatpush1.msra.mxu0 %v52
  %188 = vmatprep.subr.mxu0 0.0
  %189 = vmatpush1.msra.mxu0 %v53
  %190 = vmatprep.subr.mxu0 0.0
  %191 = vmatpush1.msra.mxu0 %v54
  %192 = vmatprep.subr.mxu0 0.0
  %193 = vmatpush1.msra.mxu0 %v55
  %194 = vmatprep.subr.mxu0 0.0
  %195 = vmatpush1.msra.mxu0 %v56
  %196 = vmatprep.subr.mxu0 0.0
  %197 = vmatpush1.msra.mxu0 %v57
  %198 = vmatprep.subr.mxu0 0.0
  %199 = vmatpush1.msra.mxu0 %v58
  %200 = vmatprep.mubr.f32.mxu0 %v21
  %201 = vmatmul.mubr.f32.gmra.mrb[0].mxu0 %v20
  %v202 = vpop.f32.mrb[0].mxu0
  %v203 = vadd.f32 %v130, %v202
  %v204 = vpop.f32.mrb[0].mxu0
  %205 = vdwg.mxu0
  %206 = vmatprep.subr.mxu0 0.0
  %207 = vmatpush1.msra.mxu0 %v59
  %208 = vmatprep.subr.mxu0 0.0
  %209 = vmatpush1.msra.mxu0 %v60
  %210 = vmatprep.subr.mxu0 0.0
  %211 = vmatpush1.msra.mxu0 %v61
  %212 = vmatprep.subr.mxu0 0.0
  %213 = vmatpush1.msra.mxu0 %v62
  %214 = vmatprep.subr.mxu0 0.0
  %215 = vmatpush1.msra.mxu0 %v63
  %216 = vmatprep.subr.mxu0 0.0
  %217 = vmatpush1.msra.mxu0 %v64
  %218 = vmatprep.subr.mxu0 0.0
  %219 = vmatpush1.msra.mxu0 %v65
  %220 = vmatprep.subr.mxu0 0.0
  %221 = vmatpush1.msra.mxu0 %v66
  %222 = vmatprep.subr.mxu0 0.0
  %223 = vmatpush1.msra.mxu0 %v67
  %224 = vmatprep.subr.mxu0 0.0
  %225 = vmatpush1.msra.mxu0 %v68
  %226 = vmatprep.subr.mxu0 0.0
  %227 = vmatpush1.msra.mxu0 %v69
  %228 = vmatprep.subr.mxu0 0.0
  %229 = vmatpush1.msra.mxu0 %v70
  %230 = vmatprep.subr.mxu0 0.0
  %231 = vmatpush1.msra.mxu0 %v71
  %232 = vmatprep.subr.mxu0 0.0
  %233 = vmatpush1.msra.mxu0 %v72
  %234 = vmatprep.subr.mxu0 0.0
  %235 = vmatpush1.msra.mxu0 %v73
  %236 = vmatprep.subr.mxu0 0.0
  %237 = vmatpush1.msra.mxu0 %v74
  %238 = vmatprep.subr.mxu0 0.0
  %239 = vmatpush1.msra.mxu0 %v75
  %240 = vmatprep.subr.mxu0 0.0
  %241 = vmatpush1.msra.mxu0 %v76
  %242 = vmatprep.subr.mxu0 0.0
  %243 = vmatpush1.msra.mxu0 %v77
  %244 = vmatprep.subr.mxu0 0.0
  %245 = vmatpush1.msra.mxu0 %v78
  %246 = vmatprep.subr.mxu0 0.0
  %247 = vmatpush1.msra.mxu0 %v79
  %248 = vmatprep.subr.mxu0 0.0
  %249 = vmatpush1.msra.mxu0 %v80
  %250 = vmatprep.subr.mxu0 0.0
  %251 = vmatpush1.msra.mxu0 %v81
  %252 = vmatprep.subr.mxu0 0.0
  %253 = vmatpush1.msra.mxu0 %v82
  %254 = vmatprep.subr.mxu0 0.0
  %255 = vmatpush1.msra.mxu0 %v83
  %256 = vmatprep.subr.mxu0 0.0
  %257 = vmatpush1.msra.mxu0 %v84
  %258 = vmatprep.subr.mxu0 0.0
  %259 = vmatpush1.msra.mxu0 %v85
  %260 = vmatprep.subr.mxu0 0.0
  %261 = vmatpush1.msra.mxu0 %v86
  %262 = vmatprep.subr.mxu0 0.0
  %263 = vmatpush1.msra.mxu0 %v87
  %264 = vmatprep.subr.mxu0 0.0
  %265 = vmatpush1.msra.mxu0 %v88
  %266 = vmatprep.subr.mxu0 0.0
  %267 = vmatpush1.msra.mxu0 %v89
  %268 = vmatprep.subr.mxu0 0.0
  %269 = vmatpush1.msra.mxu0 %v90
  %270 = vmatprep.mubr.f32.mxu0 %v23
  %271 = vmatmul.mubr.f32.gmra.mrb[0].mxu0 %v22
  %v272 = vpop.f32.mrb[0].mxu0
  %v273 = vadd.f32 %v203, %v272
  %v274 = vpop.f32.mrb[0].mxu0
  %275 = vdwg.mxu0
  %276 = vmatprep.subr.mxu0 0.0
  %277 = vmatpush1.msra.mxu0 %v91
  %278 = vmatprep.subr.mxu0 0.0
  %279 = vmatpush1.msra.mxu0 %v92
  %280 = vmatprep.subr.mxu0 0.0
  %281 = vmatpush1.msra.mxu0 %v93
  %282 = vmatprep.subr.mxu0 0.0
  %283 = vmatpush1.msra.mxu0 %v94
  %284 = vmatprep.subr.mxu0 0.0
  %285 = vmatpush1.msra.mxu0 %v95
  %286 = vmatprep.subr.mxu0 0.0
  %287 = vmatpush1.msra.mxu0 %v96
  %288 = vmatprep.subr.mxu0 0.0
  %289 = vmatpush1.msra.mxu0 %v97
  %290 = vmatprep.subr.mxu0 0.0
  %291 = vmatpush1.msra.mxu0 %v98
  %292 = vmatprep.subr.mxu0 0.0
  %293 = vmatpush1.msra.mxu0 %v99
  %294 = vmatprep.subr.mxu0 0.0
  %295 = vmatpush1.msra.mxu0 %v100
  %296 = vmatprep.subr.mxu0 0.0
  %297 = vmatpush1.msra.mxu0 %v101
  %298 = vmatprep.subr.mxu0 0.0
  %299 = vmatpush1.msra.mxu0 %v102
  %300 = vmatprep.subr.mxu0 0.0
  %301 = vmatpush1.msra.mxu0 %v103
  %302 = vmatprep.subr.mxu0 0.0
  %303 = vmatpush1.msra.mxu0 %v104
  %304 = vmatprep.subr.mxu0 0.0
  %305 = vmatpush1.msra.mxu0 %v105
  %306 = vmatprep.subr.mxu0 0.0
  %307 = vmatpush1.msra.mxu0 %v106
  %308 = vmatprep.subr.mxu0 0.0
  %309 = vmatpush1.msra.mxu0 %v107
  %310 = vmatprep.subr.mxu0 0.0
  %311 = vmatpush1.msra.mxu0 %v108
  %312 = vmatprep.subr.mxu0 0.0
  %313 = vmatpush1.msra.mxu0 %v109
  %314 = vmatprep.subr.mxu0 0.0
  %315 = vmatpush1.msra.mxu0 %v110
  %316 = vmatprep.subr.mxu0 0.0
  %317 = vmatpush1.msra.mxu0 %v111
  %318 = vmatprep.subr.mxu0 0.0
  %319 = vmatpush1.msra.mxu0 %v112
  %320 = vmatprep.subr.mxu0 0.0
  %321 = vmatpush1.msra.mxu0 %v113
  %322 = vmatprep.subr.mxu0 0.0
  %323 = vmatpush1.msra.mxu0 %v114
  %324 = vmatprep.subr.mxu0 0.0
  %325 = vmatpush1.msra.mxu0 %v115
  %326 = vmatprep.subr.mxu0 0.0
  %327 = vmatpush1.msra.mxu0 %v116
  %328 = vmatprep.subr.mxu0 0.0
  %329 = vmatpush1.msra.mxu0 %v117
  %330 = vmatprep.subr.mxu0 0.0
  %331 = vmatpush1.msra.mxu0 %v118
  %332 = vmatprep.subr.mxu0 0.0
  %333 = vmatpush1.msra.mxu0 %v119
  %334 = vmatprep.subr.mxu0 0.0
  %335 = vmatpush1.msra.mxu0 %v120
  %336 = vmatprep.subr.mxu0 0.0
  %337 = vmatpush1.msra.mxu0 %v121
  %338 = vmatprep.subr.mxu0 0.0
  %339 = vmatpush1.msra.mxu0 %v122
  %340 = vmatprep.mubr.f32.mxu0 %v25
  %341 = vmatmul.mubr.f32.gmra.mrb[0].mxu0 %v24
  %v342 = vpop.f32.mrb[0].mxu0
  %v343 = vadd.f32 %v273, %v342
  %v344 = vpop.f32.mrb[0].mxu0
  %345 = vdwg.mxu0
  %346 = vmatprep.subr.mxu0 0.0
  %347 = vmatpush1.msra.mxu0 %v123
  %348 = vmatprep.subr.mxu0 0.0
  %349 = vmatpush1.msra.mxu0 %v124
  %350 = vmatprep.subr.mxu0 0.0
  %351 = vmatpush1.msra.mxu0 0.0
  %352 = vmatprep.subr.mxu0 0.0
  %353 = vmatpush1.msra.mxu0 0.0
  %354 = vmatprep.subr.mxu0 0.0
  %355 = vmatpush1.msra.mxu0 0.0
  %356 = vmatprep.subr.mxu0 0.0
  %357 = vmatpush1.msra.mxu0 0.0
  %358 = vmatprep.subr.mxu0 0.0
  %359 = vmatpush1.msra.mxu0 0.0
  %360 = vmatprep.subr.mxu0 0.0
  %361 = vmatpush1.msra.mxu0 0.0
  %362 = vmatprep.subr.mxu0 0.0
  %363 = vmatpush1.msra.mxu0 0.0
  %364 = vmatprep.subr.mxu0 0.0
  %365 = vmatpush1.msra.mxu0 0.0
  %366 = vmatprep.subr.mxu0 0.0
  %367 = vmatpush1.msra.mxu0 0.0
  %368 = vmatprep.subr.mxu0 0.0
  %369 = vmatpush1.msra.mxu0 0.0
  %370 = vmatprep.subr.mxu0 0.0
  %371 = vmatpush1.msra.mxu0 0.0
  %372 = vmatprep.subr.mxu0 0.0
  %373 = vmatpush1.msra.mxu0 0.0
  %374 = vmatprep.subr.mxu0 0.0
  %375 = vmatpush1.msra.mxu0 0.0
  %376 = vmatprep.subr.mxu0 0.0
  %377 = vmatpush1.msra.mxu0 0.0
  %378 = vmatprep.subr.mxu0 0.0
  %379 = vmatpush1.msra.mxu0 0.0
  %380 = vmatprep.subr.mxu0 0.0
  %381 = vmatpush1.msra.mxu0 0.0
  %382 = vmatprep.subr.mxu0 0.0
  %383 = vmatpush1.msra.mxu0 0.0
  %384 = vmatprep.subr.mxu0 0.0
  %385 = vmatpush1.msra.mxu0 0.0
  %386 = vmatprep.subr.mxu0 0.0
  %387 = vmatpush1.msra.mxu0 0.0
  %388 = vmatprep.subr.mxu0 0.0
  %389 = vmatpush1.msra.mxu0 0.0
  %390 = vmatprep.subr.mxu0 0.0
  %391 = vmatpush1.msra.mxu0 0.0
  %392 = vmatprep.subr.mxu0 0.0
  %393 = vmatpush1.msra.mxu0 0.0
  %394 = vmatprep.subr.mxu0 0.0
  %395 = vmatpush1.msra.mxu0 0.0
  %396 = vmatprep.subr.mxu0 0.0
  %397 = vmatpush1.msra.mxu0 0.0
  %398 = vmatprep.subr.mxu0 0.0
  %399 = vmatpush1.msra.mxu0 0.0
  %400 = vmatprep.subr.mxu0 0.0
  %401 = vmatpush1.msra.mxu0 0.0
  %402 = vmatprep.subr.mxu0 0.0
  %403 = vmatpush1.msra.mxu0 0.0
  %404 = vmatprep.subr.mxu0 0.0
  %405 = vmatpush1.msra.mxu0 0.0
  %406 = vmatprep.subr.mxu0 0.0
  %407 = vmatpush1.msra.mxu0 0.0
  %408 = vmatprep.subr.mxu0 0.0
  %409 = vmatpush1.msra.mxu0 0.0
  %410 = vmatprep.mubr.f32.mxu0 0.0
  %411 = vmatmul.mubr.f32.gmra.mrb[0].mxu0 %v134
  %v412 = vpop.f32.mrb[0].mxu0
  %v413 = vadd.f32 %v343, %v412
  %v414 = vpop.f32.mrb[0].mxu0
  %415 = vdwg.mxu0
  %v416 = vld [vmem:[%s3] sm:$0xff]
  %v417 = vld [vmem:[%s3 + $0x8] sm:$0xff]
  %v418 = vld [vmem:[%s3 + $0x10] sm:$0xff]
  %v419 = vld [vmem:[%s3 + $0x18] sm:$0xff]
  %v420 = vld [vmem:[%s3 + $0x20] sm:$0xff]
  %v421 = vld [vmem:[%s3 + $0x28] sm:$0xff]
  %v422 = vld [vmem:[%s3 + $0x30] sm:$0xff]
  %v423 = vld [vmem:[%s3 + $0x38] sm:$0xff]
  %v424 = vld [vmem:[%s3 + $0x40] sm:$0xff]
  %v425 = vld [vmem:[%s3 + $0x48] sm:$0xff]
  %v426 = vld [vmem:[%s3 + $0x50] sm:$0xff]
  %v427 = vld [vmem:[%s3 + $0x58] sm:$0xff]
  %v428 = vld [vmem:[%s3 + $0x60] sm:$0xff]
  %v429 = vld [vmem:[%s3 + $0x68] sm:$0xff]
  %v430 = vld [vmem:[%s3 + $0x70] sm:$0xf]
  %v431 = vld [vmem:[%s3 + $0x78] sm:$0xf]
  %v432 = vld [vmem:[%s3 + $0x80] sm:$0xf]
  %v433 = vld [vmem:[%s3 + $0x88] sm:$0xf]
  %v434 = vld [vmem:[%s3 + $0x90] sm:$0xf]
  %v435 = vld [vmem:[%s3 + $0x98] sm:$0xf]
  %v436 = vld [vmem:[%s3 + $0xa0] sm:$0xf]
  %v437 = vld [vmem:[%s4] sm:$0x7f]
  %v439 = vlaneseq
  %v440 = vshrl.u32 %v439, 7
  %v441 = vsub.s32 0, %v440
  %v442 = vrot.slane %v437, %v441
  %v443 = vlaneseq
  %v444 = vshrl.u32 %v443, 7
  %v445 = vsub.s32 1, %v444
  %v446 = vrot.slane %v437, %v445
  %v447 = vlaneseq
  %v448 = vshrl.u32 %v447, 7
  %v449 = vsub.s32 2, %v448
  %v450 = vrot.slane %v437, %v449
  %v451 = vlaneseq
  %v452 = vshrl.u32 %v451, 7
  %v453 = vsub.s32 3, %v452
  %v454 = vrot.slane %v437, %v453
  %v455 = vlaneseq
  %v456 = vshrl.u32 %v455, 7
  %v457 = vsub.s32 4, %v456
  %v458 = vrot.slane %v437, %v457
  %v459 = vlaneseq
  %v460 = vshrl.u32 %v459, 7
  %v461 = vsub.s32 5, %v460
  %v462 = vrot.slane %v437, %v461
  %v463 = vlaneseq
  %v464 = vshrl.u32 %v463, 7
  %v465 = vsub.s32 6, %v464
  %v466 = vrot.slane %v437, %v465
  %vm474 = vcmask 162816
  %v476 = vsel %vm474, %v413, 0
  %vm478 = vcmask 1043456
  %v480 = vsel %vm478, %v430, 0
  %v483 = vsel %vm478, %v431, 0
  %v486 = vsel %vm478, %v432, 0
  %v489 = vsel %vm478, %v433, 0
  %v492 = vsel %vm478, %v434, 0
  %v495 = vsel %vm478, %v435, 0
  %v498 = vsel %vm478, %v436, 0
  %500 = vmatprep.subr.mxu0 %v417
  %501 = vmatpush1.msra.mxu0 %v416
  %502 = vmatprep.subr.mxu0 %v424
  %503 = vmatpush1.msra.mxu0 %v423
  %504 = vmatprep.subr.mxu0 %v483
  %505 = vmatpush1.msra.mxu0 %v480
  %506 = vmatprep.subr.mxu0 0.0
  %507 = vmatpush1.msra.mxu0 0.0
  %508 = vmatprep.subr.mxu0 0.0
  %509 = vmatpush1.msra.mxu0 0.0
  %510 = vmatprep.subr.mxu0 0.0
  %511 = vmatpush1.msra.mxu0 0.0
  %512 = vmatprep.subr.mxu0 0.0
  %513 = vmatpush1.msra.mxu0 0.0
  %514 = vmatprep.subr.mxu0 0.0
  %515 = vmatpush1.msra.mxu0 0.0
  %516 = vmatprep.subr.mxu0 0.0
  %517 = vmatpush1.msra.mxu0 0.0
  %518 = vmatprep.subr.mxu0 0.0
  %519 = vmatpush1.msra.mxu0 0.0
  %520 = vmatprep.subr.mxu0 0.0
  %521 = vmatpush1.msra.mxu0 0.0
  %522 = vmatprep.subr.mxu0 0.0
  %523 = vmatpush1.msra.mxu0 0.0
  %524 = vmatprep.subr.mxu0 0.0
  %525 = vmatpush1.msra.mxu0 0.0
  %526 = vmatprep.subr.mxu0 0.0
  %527 = vmatpush1.msra.mxu0 0.0
  %528 = vmatprep.subr.mxu0 0.0
  %529 = vmatpush1.msra.mxu0 0.0
  %530 = vmatprep.subr.mxu0 0.0
  %531 = vmatpush1.msra.mxu0 0.0
  %532 = vmatprep.subr.mxu0 0.0
  %533 = vmatpush1.msra.mxu0 0.0
  %534 = vmatprep.subr.mxu0 0.0
  %535 = vmatpush1.msra.mxu0 0.0
  %536 = vmatprep.subr.mxu0 0.0
  %537 = vmatpush1.msra.mxu0 0.0
  %538 = vmatprep.subr.mxu0 0.0
  %539 = vmatpush1.msra.mxu0 0.0
  %540 = vmatprep.subr.mxu0 0.0
  %541 = vmatpush1.msra.mxu0 0.0
  %542 = vmatprep.subr.mxu0 0.0
  %543 = vmatpush1.msra.mxu0 0.0
  %544 = vmatprep.subr.mxu0 0.0
  %545 = vmatpush1.msra.mxu0 0.0
  %546 = vmatprep.subr.mxu0 0.0
  %547 = vmatpush1.msra.mxu0 0.0
  %548 = vmatprep.subr.mxu0 0.0
  %549 = vmatpush1.msra.mxu0 0.0
  %550 = vmatprep.subr.mxu0 0.0
  %551 = vmatpush1.msra.mxu0 0.0
  %552 = vmatprep.subr.mxu0 0.0
  %553 = vmatpush1.msra.mxu0 0.0
  %554 = vmatprep.subr.mxu0 0.0
  %555 = vmatpush1.msra.mxu0 0.0
  %556 = vmatprep.subr.mxu0 0.0
  %557 = vmatpush1.msra.mxu0 0.0
  %558 = vmatprep.subr.mxu0 0.0
  %559 = vmatpush1.msra.mxu0 0.0
  %560 = vmatprep.subr.mxu0 0.0
  %561 = vmatpush1.msra.mxu0 0.0
  %562 = vmatprep.subr.mxu0 0.0
  %563 = vmatpush1.msra.mxu0 0.0
  %564 = vmatprep.mubr.f32.mxu0 0.0
  %565 = vmatmul.mubr.f32.gmra.mrb[0].mxu0 %v476
  %v566 = vpop.f32.mrb[0].mxu0
  %v567 = vadd.f32 %v442, %v566
  %v568 = vpop.f32.mrb[0].mxu0
  %v569 = vadd.f32 %v446, %v568
  %570 = vdwg.mxu0
  %571 = vmatprep.subr.mxu0 %v419
  %572 = vmatpush1.msra.mxu0 %v418
  %573 = vmatprep.subr.mxu0 %v426
  %574 = vmatpush1.msra.mxu0 %v425
  %575 = vmatprep.subr.mxu0 %v489
  %576 = vmatpush1.msra.mxu0 %v486
  %577 = vmatprep.subr.mxu0 0.0
  %578 = vmatpush1.msra.mxu0 0.0
  %579 = vmatprep.subr.mxu0 0.0
  %580 = vmatpush1.msra.mxu0 0.0
  %581 = vmatprep.subr.mxu0 0.0
  %582 = vmatpush1.msra.mxu0 0.0
  %583 = vmatprep.subr.mxu0 0.0
  %584 = vmatpush1.msra.mxu0 0.0
  %585 = vmatprep.subr.mxu0 0.0
  %586 = vmatpush1.msra.mxu0 0.0
  %587 = vmatprep.subr.mxu0 0.0
  %588 = vmatpush1.msra.mxu0 0.0
  %589 = vmatprep.subr.mxu0 0.0
  %590 = vmatpush1.msra.mxu0 0.0
  %591 = vmatprep.subr.mxu0 0.0
  %592 = vmatpush1.msra.mxu0 0.0
  %593 = vmatprep.subr.mxu0 0.0
  %594 = vmatpush1.msra.mxu0 0.0
  %595 = vmatprep.subr.mxu0 0.0
  %596 = vmatpush1.msra.mxu0 0.0
  %597 = vmatprep.subr.mxu0 0.0
  %598 = vmatpush1.msra.mxu0 0.0
  %599 = vmatprep.subr.mxu0 0.0
  %600 = vmatpush1.msra.mxu0 0.0
  %601 = vmatprep.subr.mxu0 0.0
  %602 = vmatpush1.msra.mxu0 0.0
  %603 = vmatprep.subr.mxu0 0.0
  %604 = vmatpush1.msra.mxu0 0.0
  %605 = vmatprep.subr.mxu0 0.0
  %606 = vmatpush1.msra.mxu0 0.0
  %607 = vmatprep.subr.mxu0 0.0
  %608 = vmatpush1.msra.mxu0 0.0
  %609 = vmatprep.subr.mxu0 0.0
  %610 = vmatpush1.msra.mxu0 0.0
  %611 = vmatprep.subr.mxu0 0.0
  %612 = vmatpush1.msra.mxu0 0.0
  %613 = vmatprep.subr.mxu0 0.0
  %614 = vmatpush1.msra.mxu0 0.0
  %615 = vmatprep.subr.mxu0 0.0
  %616 = vmatpush1.msra.mxu0 0.0
  %617 = vmatprep.subr.mxu0 0.0
  %618 = vmatpush1.msra.mxu0 0.0
  %619 = vmatprep.subr.mxu0 0.0
  %620 = vmatpush1.msra.mxu0 0.0
  %621 = vmatprep.subr.mxu0 0.0
  %622 = vmatpush1.msra.mxu0 0.0
  %623 = vmatprep.subr.mxu0 0.0
  %624 = vmatpush1.msra.mxu0 0.0
  %625 = vmatprep.subr.mxu0 0.0
  %626 = vmatpush1.msra.mxu0 0.0
  %627 = vmatprep.subr.mxu0 0.0
  %628 = vmatpush1.msra.mxu0 0.0
  %629 = vmatprep.subr.mxu0 0.0
  %630 = vmatpush1.msra.mxu0 0.0
  %631 = vmatprep.subr.mxu0 0.0
  %632 = vmatpush1.msra.mxu0 0.0
  %633 = vmatprep.subr.mxu0 0.0
  %634 = vmatpush1.msra.mxu0 0.0
  %635 = vmatprep.mubr.f32.mxu0 0.0
  %636 = vmatmul.mubr.f32.gmra.mrb[0].mxu0 %v476
  %v637 = vpop.f32.mrb[0].mxu0
  %v638 = vadd.f32 %v450, %v637
  %v639 = vpop.f32.mrb[0].mxu0
  %v640 = vadd.f32 %v454, %v639
  %641 = vdwg.mxu0
  %642 = vmatprep.subr.mxu0 %v421
  %643 = vmatpush1.msra.mxu0 %v420
  %644 = vmatprep.subr.mxu0 %v428
  %645 = vmatpush1.msra.mxu0 %v427
  %646 = vmatprep.subr.mxu0 %v495
  %647 = vmatpush1.msra.mxu0 %v492
  %648 = vmatprep.subr.mxu0 0.0
  %649 = vmatpush1.msra.mxu0 0.0
  %650 = vmatprep.subr.mxu0 0.0
  %651 = vmatpush1.msra.mxu0 0.0
  %652 = vmatprep.subr.mxu0 0.0
  %653 = vmatpush1.msra.mxu0 0.0
  %654 = vmatprep.subr.mxu0 0.0
  %655 = vmatpush1.msra.mxu0 0.0
  %656 = vmatprep.subr.mxu0 0.0
  %657 = vmatpush1.msra.mxu0 0.0
  %658 = vmatprep.subr.mxu0 0.0
  %659 = vmatpush1.msra.mxu0 0.0
  %660 = vmatprep.subr.mxu0 0.0
  %661 = vmatpush1.msra.mxu0 0.0
  %662 = vmatprep.subr.mxu0 0.0
  %663 = vmatpush1.msra.mxu0 0.0
  %664 = vmatprep.subr.mxu0 0.0
  %665 = vmatpush1.msra.mxu0 0.0
  %666 = vmatprep.subr.mxu0 0.0
  %667 = vmatpush1.msra.mxu0 0.0
  %668 = vmatprep.subr.mxu0 0.0
  %669 = vmatpush1.msra.mxu0 0.0
  %670 = vmatprep.subr.mxu0 0.0
  %671 = vmatpush1.msra.mxu0 0.0
  %672 = vmatprep.subr.mxu0 0.0
  %673 = vmatpush1.msra.mxu0 0.0
  %674 = vmatprep.subr.mxu0 0.0
  %675 = vmatpush1.msra.mxu0 0.0
  %676 = vmatprep.subr.mxu0 0.0
  %677 = vmatpush1.msra.mxu0 0.0
  %678 = vmatprep.subr.mxu0 0.0
  %679 = vmatpush1.msra.mxu0 0.0
  %680 = vmatprep.subr.mxu0 0.0
  %681 = vmatpush1.msra.mxu0 0.0
  %682 = vmatprep.subr.mxu0 0.0
  %683 = vmatpush1.msra.mxu0 0.0
  %684 = vmatprep.subr.mxu0 0.0
  %685 = vmatpush1.msra.mxu0 0.0
  %686 = vmatprep.subr.mxu0 0.0
  %687 = vmatpush1.msra.mxu0 0.0
  %688 = vmatprep.subr.mxu0 0.0
  %689 = vmatpush1.msra.mxu0 0.0
  %690 = vmatprep.subr.mxu0 0.0
  %691 = vmatpush1.msra.mxu0 0.0
  %692 = vmatprep.subr.mxu0 0.0
  %693 = vmatpush1.msra.mxu0 0.0
  %694 = vmatprep.subr.mxu0 0.0
  %695 = vmatpush1.msra.mxu0 0.0
  %696 = vmatprep.subr.mxu0 0.0
  %697 = vmatpush1.msra.mxu0 0.0
  %698 = vmatprep.subr.mxu0 0.0
  %699 = vmatpush1.msra.mxu0 0.0
  %700 = vmatprep.subr.mxu0 0.0
  %701 = vmatpush1.msra.mxu0 0.0
  %702 = vmatprep.subr.mxu0 0.0
  %703 = vmatpush1.msra.mxu0 0.0
  %704 = vmatprep.subr.mxu0 0.0
  %705 = vmatpush1.msra.mxu0 0.0
  %706 = vmatprep.mubr.f32.mxu0 0.0
  %707 = vmatmul.mubr.f32.gmra.mrb[0].mxu0 %v476
  %v708 = vpop.f32.mrb[0].mxu0
  %v709 = vadd.f32 %v458, %v708
  %v710 = vpop.f32.mrb[0].mxu0
  %v711 = vadd.f32 %v462, %v710
  %712 = vdwg.mxu0
  %713 = vmatprep.subr.mxu0 0.0
  %714 = vmatpush1.msra.mxu0 %v422
  %715 = vmatprep.subr.mxu0 0.0
  %716 = vmatpush1.msra.mxu0 %v429
  %717 = vmatprep.subr.mxu0 0.0
  %718 = vmatpush1.msra.mxu0 %v498
  %719 = vmatprep.subr.mxu0 0.0
  %720 = vmatpush1.msra.mxu0 0.0
  %721 = vmatprep.subr.mxu0 0.0
  %722 = vmatpush1.msra.mxu0 0.0
  %723 = vmatprep.subr.mxu0 0.0
  %724 = vmatpush1.msra.mxu0 0.0
  %725 = vmatprep.subr.mxu0 0.0
  %726 = vmatpush1.msra.mxu0 0.0
  %727 = vmatprep.subr.mxu0 0.0
  %728 = vmatpush1.msra.mxu0 0.0
  %729 = vmatprep.subr.mxu0 0.0
  %730 = vmatpush1.msra.mxu0 0.0
  %731 = vmatprep.subr.mxu0 0.0
  %732 = vmatpush1.msra.mxu0 0.0
  %733 = vmatprep.subr.mxu0 0.0
  %734 = vmatpush1.msra.mxu0 0.0
  %735 = vmatprep.subr.mxu0 0.0
  %736 = vmatpush1.msra.mxu0 0.0
  %737 = vmatprep.subr.mxu0 0.0
  %738 = vmatpush1.msra.mxu0 0.0
  %739 = vmatprep.subr.mxu0 0.0
  %740 = vmatpush1.msra.mxu0 0.0
  %741 = vmatprep.subr.mxu0 0.0
  %742 = vmatpush1.msra.mxu0 0.0
  %743 = vmatprep.subr.mxu0 0.0
  %744 = vmatpush1.msra.mxu0 0.0
  %745 = vmatprep.subr.mxu0 0.0
  %746 = vmatpush1.msra.mxu0 0.0
  %747 = vmatprep.subr.mxu0 0.0
  %748 = vmatpush1.msra.mxu0 0.0
  %749 = vmatprep.subr.mxu0 0.0
  %750 = vmatpush1.msra.mxu0 0.0
  %751 = vmatprep.subr.mxu0 0.0
  %752 = vmatpush1.msra.mxu0 0.0
  %753 = vmatprep.subr.mxu0 0.0
  %754 = vmatpush1.msra.mxu0 0.0
  %755 = vmatprep.subr.mxu0 0.0
  %756 = vmatpush1.msra.mxu0 0.0
  %757 = vmatprep.subr.mxu0 0.0
  %758 = vmatpush1.msra.mxu0 0.0
  %759 = vmatprep.subr.mxu0 0.0
  %760 = vmatpush1.msra.mxu0 0.0
  %761 = vmatprep.subr.mxu0 0.0
  %762 = vmatpush1.msra.mxu0 0.0
  %763 = vmatprep.subr.mxu0 0.0
  %764 = vmatpush1.msra.mxu0 0.0
  %765 = vmatprep.subr.mxu0 0.0
  %766 = vmatpush1.msra.mxu0 0.0
  %767 = vmatprep.subr.mxu0 0.0
  %768 = vmatpush1.msra.mxu0 0.0
  %769 = vmatprep.subr.mxu0 0.0
  %770 = vmatpush1.msra.mxu0 0.0
  %771 = vmatprep.subr.mxu0 0.0
  %772 = vmatpush1.msra.mxu0 0.0
  %773 = vmatprep.subr.mxu0 0.0
  %774 = vmatpush1.msra.mxu0 0.0
  %775 = vmatprep.subr.mxu0 0.0
  %776 = vmatpush1.msra.mxu0 0.0
  %777 = vmatprep.mubr.f32.mxu0 0.0
  %778 = vmatmul.mubr.f32.gmra.mrb[0].mxu0 %v476
  %v779 = vpop.f32.mrb[0].mxu0
  %v780 = vadd.f32 %v466, %v779
  %v781 = vpop.f32.mrb[0].mxu0
  %782 = vdwg.mxu0
  %783 = vst [vmem:[%s5] sm:$0xff] %v567
  %784 = vst [vmem:[%s5 + $0x8] sm:$0xff] %v569
  %785 = vst [vmem:[%s5 + $0x10] sm:$0xff] %v638
  %786 = vst [vmem:[%s5 + $0x18] sm:$0xff] %v640
  %787 = vst [vmem:[%s5 + $0x20] sm:$0xff] %v709
  %788 = vst [vmem:[%s5 + $0x28] sm:$0xff] %v711
  %789 = vst.msk [vmem:[%s5 + $0x30] sm:$0xff] %vm132, %v780
  // Predicated region
  $region22: #{autoencoder_forward.1} parent=0 // pred_check
    _
  $region23: #{autoencoder_forward.1} parent=0 // pred_check_branch
    %791 = sbr.rel (0) target = $region25
  $region24: #{autoencoder_forward.1} parent=0 // pred_region
    _
  $region25: #{autoencoder_forward.1} parent=0 // pred_fallthru
    _
  // Predicated region
  $region26: #{autoencoder_forward.1} parent=0 // pred_check
    _
  $region27: #{autoencoder_forward.1} parent=0 // pred_check_branch
    %793 = sbr.rel (0) target = $region29
  $region28: #{autoencoder_forward.1} parent=0 // pred_region
    _
  $region29: #{autoencoder_forward.1} parent=0 // pred_fallthru
    _

</llo_original>
